<compile_context>
chip_gen: v6e
topology: v6e:2x2x1
jax: 0.10.0
libtpu: 0.0.40
codegen_flags: <defaults>
</compile_context>

<pallas_src>
import jax
import jax.numpy as jnp
from jax.experimental import pallas as pl
from jax.experimental.pallas import tpu as pltpu


# ----------------------------- Pallas kernels ------------------------------

def _matmul_bias_kernel(cols_ref, w_ref, b_ref, o_ref):
    # cols(bf16) @ W(bf16) -> f32, + bias
    acc = jnp.dot(cols_ref[...], w_ref[...], preferred_element_type=jnp.float32)
    o_ref[...] = (acc + b_ref[...]).astype(o_ref.dtype)


def _matmul_bias_gelu_kernel(cols_ref, w_ref, b_ref, o_ref):
    # cols(bf16) @ (W*bn_scale)(bf16) -> f32, + bn_shift, then exact (erf) GELU
    acc = jnp.dot(cols_ref[...], w_ref[...], preferred_element_type=jnp.float32)
    y = acc + b_ref[...]
    inv_sqrt2 = jnp.float32(0.7071067811865476)
    o_ref[...] = (0.5 * y * (1.0 + jax.lax.erf(y * inv_sqrt2))).astype(o_ref.dtype)


def _round_up(x, m):
    return (x + m - 1) // m * m


def _multi_tensorcore():
    # v4 / v5p / v7x expose 2 TensorCores per device; keep >=2 row-grid steps there so
    # dimension_semantics=("parallel",) can actually split work across both cores.
    try:
        kind = jax.devices()[0].device_kind.lower()
    except Exception:
        return True  # conservative: one extra grid step costs ~0.35us, nothing lost
    return any(tag in kind for tag in ("v4", "v5p", "v7", "7x"))


def _pallas_matmul_bias_act(cols, w, b, *, gelu, tm_target=1024):
    """act(cols @ w + b) with bf16 MXU operands and f32 accumulate/epilogue.

    No host-side padding: rows use grid=cdiv(M, tm) with a partial final block
    (OOB reads feed only masked OOB output rows); K and N equal the full array
    dims (legal block shapes), so no zero-filled lanes are ever written to HBM.
    """
    M, K = cols.shape
    Kw, N = w.shape
    assert Kw == K

    min_steps = 2 if _multi_tensorcore() else 1
    tm = max(8, min(tm_target, _round_up(pl.cdiv(M, min_steps), 8)))
    grid = (pl.cdiv(M, tm),)

    cols_bf = cols.astype(jnp.bfloat16)
    w_bf = w.astype(jnp.bfloat16)
    b_f32 = b.reshape(1, N).astype(jnp.float32)

    kernel = _matmul_bias_gelu_kernel if gelu else _matmul_bias_kernel
    cost = pl.CostEstimate(
        flops=2 * M * K * N,
        transcendentals=(M * N) if gelu else 0,
        bytes_accessed=2 * (M * K + K * N) + 4 * (N + M * N),
    )

    return pl.pallas_call(
        kernel,
        out_shape=jax.ShapeDtypeStruct((M, N), jnp.float32),
        grid=grid,
        in_specs=[
            pl.BlockSpec((tm, K), lambda i: (i, 0)),
            pl.BlockSpec((K, N), lambda i: (0, 0)),   # weight stays resident (index unchanged)
            pl.BlockSpec((1, N), lambda i: (0, 0)),
        ],
        out_specs=pl.BlockSpec((tm, N), lambda i: (i, 0)),
        compiler_params=pltpu.CompilerParams(dimension_semantics=("parallel",)),
        cost_estimate=cost,
    )(cols_bf, w_bf, b_f32)


# ------------------------------- JAX glue -----------------------------------

def _bilinear_sample_packed(cols6, sy, sx, H, W):
    """Bilinear sampling (mmcv deformable_im2col border semantics) reading from the
    patch-packed layout cols6 = [B, Hp, Wp, kH, kW, C] (bf16) -- the same buffer that
    feeds the offset conv, so no separate NHWC copy of the image is materialized.

    sy, sx : [B, Hp, Wp, kH, kW] f32 sample coordinates in image space.
    returns [B, Hp, Wp, kH, kW, C] f32.
    """
    B, Hp, Wp, kH, kW, C = cols6.shape
    src = cols6.reshape(B, Hp * Wp * kH * kW, C)

    y0 = jnp.floor(sy)
    x0 = jnp.floor(sx)
    # 4 corners: shared index/clip/mask arithmetic, ONE combined take per image.
    yy = jnp.stack([y0, y0, y0 + 1.0, y0 + 1.0], axis=1)      # [B,4,Hp,Wp,kH,kW]
    xx = jnp.stack([x0, x0 + 1.0, x0, x0 + 1.0], axis=1)

    valid = (yy >= 0) & (yy <= H - 1) & (xx >= 0) & (xx <= W - 1)
    yc = jnp.clip(yy, 0, H - 1).astype(jnp.int32)
    xc = jnp.clip(xx, 0, W - 1).astype(jnp.int32)
    # image pixel (y, x) lives at patch (y//kH, x//kW), kernel position (y%kH, x%kW)
    hp, ki = yc // kH, yc % kH
    wp, kj = xc // kW, xc % kW
    flat = ((hp * Wp + wp) * kH + ki) * kW + kj               # index into (Hp*Wp*kH*kW)

    n = 4 * Hp * Wp * kH * kW
    g = jax.vmap(lambda s, idx: jnp.take(s, idx, axis=0))(src, flat.reshape(B, n))
    g = g.reshape(B, 4, Hp, Wp, kH, kW, C).astype(jnp.float32)
    g = jnp.where(valid[..., None], g, 0.0)

    wy1 = sy - y0
    wy0 = 1.0 - wy1
    wx1 = sx - x0
    wx0 = 1.0 - wx1
    val = ((wy0 * wx0)[..., None] * g[:, 0] + (wy0 * wx1)[..., None] * g[:, 1] +
           (wy1 * wx0)[..., None] * g[:, 2] + (wy1 * wx1)[..., None] * g[:, 3])

    gate = (sy > -1) & (sy < H) & (sx > -1) & (sx < W)
    return jnp.where(gate[..., None], val, 0.0)


def init_params(key, in_chans=4, embed_dim=32, patch_size=(4, 4)):
    kH, kW = patch_size
    k1, k2, k3 = jax.random.split(key, 3)
    fan_in = in_chans * kH * kW
    # DeformConv2d main weight (bias=False in mmcv's DeformConv2d)
    w_dconv = jax.random.normal(k1, (embed_dim, in_chans, kH, kW), jnp.float32) / jnp.sqrt(fan_in)
    # conv_offset: deform_groups(=1) * 2 * kH * kW output channels (same kernel/stride/pad).
    # (the real module zero-inits these; small values exercise the sampling path)
    w_offset = 0.05 * jax.random.normal(k2, (2 * kH * kW, in_chans, kH, kW), jnp.float32) / jnp.sqrt(fan_in)
    b_offset = 0.05 * jax.random.normal(k3, (2 * kH * kW,), jnp.float32)
    return dict(
        patch_size=(kH, kW),
        embed_dim=embed_dim,
        w_dconv=w_dconv,
        w_offset=w_offset,
        b_offset=b_offset,
        bn_gamma=jnp.ones((embed_dim,), jnp.float32),   # module __init__: constant 1
        bn_beta=jnp.zeros((embed_dim,), jnp.float32),   # module __init__: constant 0
        bn_mean=jnp.zeros((embed_dim,), jnp.float32),
        bn_var=jnp.ones((embed_dim,), jnp.float32),
        bn_eps=jnp.float32(1e-5),
    )


def deformable_patch_embed_gelu(params, x, return_offset=False):
    """Forward pass matching DeformablePatchEmbed_GELU (x: NCHW float)."""
    B, C, H, W = x.shape
    kH, kW = params["patch_size"]
    assert H % kH == 0 and W % kW == 0
    Hp, Wp = H // kH, W // kW
    P = Hp * Wp
    K = kH * kW * C
    Cout = params["w_dconv"].shape[0]

    # single input layout transform: NCHW -> patch-packed [B,Hp,Wp,kH,kW,C] bf16.
    # This one buffer is (a) the im2col matrix of the offset conv and (b) the gather
    # source of the deformable im2col.
    x_bf = x.astype(jnp.bfloat16)
    cols6 = (x_bf.reshape(B, C, Hp, kH, Wp, kW)
                 .transpose(0, 2, 4, 3, 5, 1))                 # [B,Hp,Wp,kH,kW,C]
    cols_patch = cols6.reshape(B * P, K)                       # reduction order (ki,kj,c)

    # offset conv (regular conv, stride=kernel, pad=0) -> Pallas matmul + bias
    w_off = params["w_offset"].transpose(2, 3, 1, 0).reshape(K, 2 * kH * kW)
    off_flat = _pallas_matmul_bias_act(cols_patch, w_off, params["b_offset"], gelu=False)

    # conv_offset channel layout: channel 2*(ki*kW+kj) = dy, +1 = dx
    off = off_flat.reshape(B, Hp, Wp, kH * kW, 2)
    off_y = off[..., 0].reshape(B, Hp, Wp, kH, kW)
    off_x = off[..., 1].reshape(B, Hp, Wp, kH, kW)

    # base sampling grid (stride == kernel, padding 0, dilation 1)
    py = (jnp.arange(Hp) * kH)[:, None] + jnp.arange(kH)[None, :]
    px = (jnp.arange(Wp) * kW)[:, None] + jnp.arange(kW)[None, :]
    sy = off_y + py[None, :, None, :, None].astype(jnp.float32)
    sx = off_x + px[None, None, :, None, :].astype(jnp.float32)

    # TODO(synk): fully fusing this data-dependent bilinear gather into the deform matmul
    # kernel (VMEM-resident image slab + in-kernel gather) needs gather lowering that is
    # not reliably available; it stays in XLA but uses one combined 4-corner take on the
    # packed bf16 buffer and the result is written once as bf16 cols_def.
    sampled = _bilinear_sample_packed(cols6, sy, sx, H, W)     # f32 [B,Hp,Wp,kH,kW,C]
    cols_def = sampled.astype(jnp.bfloat16).reshape(B * P, K)

    # deformable conv as matmul; BN(eval) scale folded into the weight, shift as bias;
    # exact (erf) GELU fused in the Pallas epilogue.
    scale = params["bn_gamma"] / jnp.sqrt(params["bn_var"] + params["bn_eps"])
    shift = params["bn_beta"] - params["bn_mean"] * scale
    w_d = params["w_dconv"].transpose(2, 3, 1, 0).reshape(K, Cout) * scale[None, :]
    out = _pallas_matmul_bias_act(cols_def, w_d, shift, gelu=True)

    out = out.reshape(B, P, Cout)   # contiguous -> free; == .flatten(2).transpose(1,2)
    if return_offset:
        offset_nchw = off_flat.reshape(B, Hp, Wp, 2 * kH * kW).transpose(0, 3, 1, 2)
        return out, (Hp, Wp), offset_nchw
    return out, (Hp, Wp)


# --------------------------------- main -------------------------------------

if __name__ == "__main__":
    key = jax.random.PRNGKey(0)
    pkey, xkey = jax.random.split(key)

    B, C, H, W = 2, 4, 16, 16
    patch = (4, 4)
    embed_dim = 32
    kH, kW = patch
    Hp, Wp = H // kH, W // kW

    params = init_params(pkey, in_chans=C, embed_dim=embed_dim, patch_size=patch)
    x = jax.random.normal(xkey, (B, C, H, W), jnp.float32)

    @jax.jit
    def fwd(xx):
        o, _, off = deformable_patch_embed_gelu(params, xx, return_offset=True)
        return o, off

    out, offset = fwd(x)
    out = jax.block_until_ready(out)
    assert out.shape == (B, Hp * Wp, embed_dim), out.shape

    # ---- correctness check against a pure-JAX reference (same bf16 operand precision) ----
    x_bf = x.astype(jnp.bfloat16)

    # 1) offset conv vs lax.conv (independent of the in-house im2col layout)
    ref_off = jax.lax.conv_general_dilated(
        x_bf, params["w_offset"].astype(jnp.bfloat16), (kH, kW), "VALID",
        dimension_numbers=("NCHW", "OIHW", "NCHW"),
        preferred_element_type=jnp.float32,
    ) + params["b_offset"][None, :, None, None]
    assert jnp.allclose(offset, ref_off, atol=2e-3, rtol=2e-3)

    # 2) deformable conv + BN + GELU, with a straightforward NHWC bilinear gather
    #    (independent of the packed-layout index remapping used in the implementation)
    off_r = jnp.transpose(offset, (0, 2, 3, 1)).reshape(B, Hp, Wp, kH * kW, 2)
    off_y = off_r[..., 0].reshape(B, Hp, Wp, kH, kW)
    off_x = off_r[..., 1].reshape(B, Hp, Wp, kH, kW)
    py = (jnp.arange(Hp) * kH)[:, None] + jnp.arange(kH)[None, :]
    px = (jnp.arange(Wp) * kW)[:, None] + jnp.arange(kW)[None, :]
    sy = off_y + py[None, :, None, :, None].astype(jnp.float32)
    sx = off_x + px[None, None, :, None, :].astype(jnp.float32)

    xf = jnp.transpose(x_bf, (0, 2, 3, 1)).reshape(B, H * W, C)
    y0 = jnp.floor(sy)
    x0 = jnp.floor(sx)

    def corner(yy, xx):
        valid = (yy >= 0) & (yy <= H - 1) & (xx >= 0) & (xx <= W - 1)
        yi = jnp.clip(yy, 0, H - 1).astype(jnp.int32)
        xi = jnp.clip(xx, 0, W - 1).astype(jnp.int32)
        lin = (yi * W + xi).reshape(B, -1)
        g = jax.vmap(lambda img, idx: jnp.take(img, idx, axis=0))(xf, lin)
        g = g.reshape(B, Hp, Wp, kH, kW, C).astype(jnp.float32)
        return jnp.where(valid[..., None], g, 0.0)

    wy1 = sy - y0; wy0 = 1.0 - wy1
    wx1 = sx - x0; wx0 = 1.0 - wx1
    val = ((wy0 * wx0)[..., None] * corner(y0, x0) +
           (wy0 * wx1)[..., None] * corner(y0, x0 + 1) +
           (wy1 * wx0)[..., None] * corner(y0 + 1, x0) +
           (wy1 * wx1)[..., None] * corner(y0 + 1, x0 + 1))
    gate = (sy > -1) & (sy < H) & (sx > -1) & (sx < W)
    sampled_ref = jnp.where(gate[..., None], val, 0.0)

    cols_ref = sampled_ref.astype(jnp.bfloat16).reshape(B * Hp * Wp, kH * kW * C)
    scale = params["bn_gamma"] / jnp.sqrt(params["bn_var"] + params["bn_eps"])
    shift = params["bn_beta"] - params["bn_mean"] * scale
    w_ref = (params["w_dconv"].transpose(2, 3, 1, 0).reshape(kH * kW * C, embed_dim)
             * scale[None, :]).astype(jnp.bfloat16)
    y = jnp.dot(cols_ref, w_ref, preferred_element_type=jnp.float32) + shift[None, :]
    ref = (0.5 * y * (1.0 + jax.lax.erf(y / jnp.sqrt(2.0)))).reshape(B, Hp * Wp, embed_dim)
    assert jnp.allclose(out, ref, atol=2e-3, rtol=2e-3)

    print("KERNEL_OK")
</pallas_src>

<mosaic_0001>
module attributes {stable_mosaic.version = 11 : i64} {
  func.func @_matmul_bias_kernel(%arg0: i32, %arg1: memref<32x64xbf16, #tpu.memory_space<vmem>>, %arg2: memref<64x32xbf16, #tpu.memory_space<vmem>>, %arg3: memref<1x32xf32, #tpu.memory_space<vmem>>, %arg4: memref<32x32xf32, #tpu.memory_space<vmem>>) attributes {dimension_semantics = [#tpu.dimension_semantics<parallel>], iteration_bounds = array<i64: 1>, scalar_prefetch = 0 : i64, scratch_operands = 0 : i64, tpu.core_type = #tpu.core_type<tc>, window_params = [{transform_indices = @transform_0, window_bounds = array<i64: 32, 64>}, {pipeline_mode = #tpu.pipeline_mode<synchronous>, transform_indices = @transform_1, window_bounds = array<i64: 64, 32>}, {pipeline_mode = #tpu.pipeline_mode<synchronous>, transform_indices = @transform_2, window_bounds = array<i64: 1, 32>}, {transform_indices = @transform_3, window_bounds = array<i64: 32, 32>}]} {
    %c0 = arith.constant 0 : index
    %c0_0 = arith.constant 0 : index
    %0 = vector.load %arg1[%c0, %c0_0] : memref<32x64xbf16, #tpu.memory_space<vmem>>, vector<32x64xbf16>
    %c0_1 = arith.constant 0 : index
    %c0_2 = arith.constant 0 : index
    %1 = vector.load %arg2[%c0_1, %c0_2] : memref<64x32xbf16, #tpu.memory_space<vmem>>, vector<64x32xbf16>
    %cst = arith.constant dense<0.000000e+00> : vector<32x32xf32>
    %2 = tpu.matmul %0, %1, %cst {dimension_numbers = #tpu.dot_dimension_numbers<[1], [0], [0], [1], [0, 0, 1, 1], [], []>} : vector<32x64xbf16>, vector<64x32xbf16>, vector<32x32xf32> -> vector<32x32xf32>
    %c0_3 = arith.constant 0 : index
    %c0_4 = arith.constant 0 : index
    %3 = vector.load %arg3[%c0_3, %c0_4] : memref<1x32xf32, #tpu.memory_space<vmem>>, vector<1x32xf32>
    %4 = vector.broadcast %3 : vector<1x32xf32> to vector<32x32xf32>
    %5 = arith.addf %2, %4 : vector<32x32xf32>
    %c0_5 = arith.constant 0 : index
    %c0_6 = arith.constant 0 : index
    %6 = vector.load %arg4[%c0_5, %c0_6] : memref<32x32xf32, #tpu.memory_space<vmem>>, vector<32x32xf32>
    tpu.vector_store %arg4[%c0_5, %c0_6], %5 {strides = array<i32>} : memref<32x32xf32, #tpu.memory_space<vmem>>, vector<32x32xf32>,
    return
  }
  func.func @transform_0(%arg0: i32) -> (i32, i32) {
    %c0_i32 = arith.constant 0 : i32
    %c0_i32_0 = arith.constant 0 : i32
    return %arg0, %c0_i32 : i32, i32
  }
  func.func @transform_1(%arg0: i32) -> (i32, i32) {
    %c0_i32 = arith.constant 0 : i32
    %c0_i32_0 = arith.constant 0 : i32
    %c0_i32_1 = arith.constant 0 : i32
    return %c0_i32, %c0_i32_0 : i32, i32
  }
  func.func @transform_2(%arg0: i32) -> (i32, i32) {
    %c0_i32 = arith.constant 0 : i32
    %c0_i32_0 = arith.constant 0 : i32
    %c0_i32_1 = arith.constant 0 : i32
    return %c0_i32, %c0_i32_0 : i32, i32
  }
  func.func @transform_3(%arg0: i32) -> (i32, i32) {
    %c0_i32 = arith.constant 0 : i32
    %c0_i32_0 = arith.constant 0 : i32
    return %arg0, %c0_i32 : i32, i32
  }
}

module attributes {stable_mosaic.version = 11 : i64} {
  func.func @_matmul_bias_gelu_kernel(%arg0: i32, %arg1: memref<32x64xbf16, #tpu.memory_space<vmem>>, %arg2: memref<64x32xbf16, #tpu.memory_space<vmem>>, %arg3: memref<1x32xf32, #tpu.memory_space<vmem>>, %arg4: memref<32x32xf32, #tpu.memory_space<vmem>>) attributes {dimension_semantics = [#tpu.dimension_semantics<parallel>], iteration_bounds = array<i64: 1>, scalar_prefetch = 0 : i64, scratch_operands = 0 : i64, tpu.core_type = #tpu.core_type<tc>, window_params = [{transform_indices = @transform_0, window_bounds = array<i64: 32, 64>}, {pipeline_mode = #tpu.pipeline_mode<synchronous>, transform_indices = @transform_1, window_bounds = array<i64: 64, 32>}, {pipeline_mode = #tpu.pipeline_mode<synchronous>, transform_indices = @transform_2, window_bounds = array<i64: 1, 32>}, {transform_indices = @transform_3, window_bounds = array<i64: 32, 32>}]} {
    %c0 = arith.constant 0 : index
    %c0_0 = arith.constant 0 : index
    %0 = vector.load %arg1[%c0, %c0_0] : memref<32x64xbf16, #tpu.memory_space<vmem>>, vector<32x64xbf16>
    %c0_1 = arith.constant 0 : index
    %c0_2 = arith.constant 0 : index
    %1 = vector.load %arg2[%c0_1, %c0_2] : memref<64x32xbf16, #tpu.memory_space<vmem>>, vector<64x32xbf16>
    %cst = arith.constant dense<0.000000e+00> : vector<32x32xf32>
    %2 = tpu.matmul %0, %1, %cst {dimension_numbers = #tpu.dot_dimension_numbers<[1], [0], [0], [1], [0, 0, 1, 1], [], []>} : vector<32x64xbf16>, vector<64x32xbf16>, vector<32x32xf32> -> vector<32x32xf32>
    %c0_3 = arith.constant 0 : index
    %c0_4 = arith.constant 0 : index
    %3 = vector.load %arg3[%c0_3, %c0_4] : memref<1x32xf32, #tpu.memory_space<vmem>>, vector<1x32xf32>
    %4 = vector.broadcast %3 : vector<1x32xf32> to vector<32x32xf32>
    %5 = arith.addf %2, %4 : vector<32x32xf32>
    %cst_5 = arith.constant 5.000000e-01 : f32
    %6 = vector.broadcast %cst_5 : f32 to vector<32x32xf32>
    %7 = arith.mulf %6, %5 : vector<32x32xf32>
    %cst_6 = arith.constant 0.707106769 : f32
    %8 = vector.broadcast %cst_6 : f32 to vector<32x32xf32>
    %9 = arith.mulf %5, %8 : vector<32x32xf32>
    %10 = math.erf %9 : vector<32x32xf32>
    %cst_7 = arith.constant 1.000000e+00 : f32
    %11 = vector.broadcast %cst_7 : f32 to vector<32x32xf32>
    %12 = arith.addf %11, %10 : vector<32x32xf32>
    %13 = arith.mulf %7, %12 : vector<32x32xf32>
    %c0_8 = arith.constant 0 : index
    %c0_9 = arith.constant 0 : index
    %14 = vector.load %arg4[%c0_8, %c0_9] : memref<32x32xf32, #tpu.memory_space<vmem>>, vector<32x32xf32>
    tpu.vector_store %arg4[%c0_8, %c0_9], %13 {strides = array<i32>} : memref<32x32xf32, #tpu.memory_space<vmem>>, vector<32x32xf32>,
    return
  }
  func.func @transform_0(%arg0: i32) -> (i32, i32) {
    %c0_i32 = arith.constant 0 : i32
    %c0_i32_0 = arith.constant 0 : i32
    return %arg0, %c0_i32 : i32, i32
  }
  func.func @transform_1(%arg0: i32) -> (i32, i32) {
    %c0_i32 = arith.constant 0 : i32
    %c0_i32_0 = arith.constant 0 : i32
    %c0_i32_1 = arith.constant 0 : i32
    return %c0_i32, %c0_i32_0 : i32, i32
  }
  func.func @transform_2(%arg0: i32) -> (i32, i32) {
    %c0_i32 = arith.constant 0 : i32
    %c0_i32_0 = arith.constant 0 : i32
    %c0_i32_1 = arith.constant 0 : i32
    return %c0_i32, %c0_i32_0 : i32, i32
  }
  func.func @transform_3(%arg0: i32) -> (i32, i32) {
    %c0_i32 = arith.constant 0 : i32
    %c0_i32_0 = arith.constant 0 : i32
    return %arg0, %c0_i32 : i32, i32
  }
}

</mosaic_0001>

<llo_original>
// kernel: fwd.2
$region0: #{fwd.2}
  #allocation0 [shape = 'u32[]', space=smem, size = 0x4, offset = 0x4, fixed_abs, tag = 'smem constant byte address 0x4 - core index']
  #allocation1 [shape = 'u32[144,128]{1,0:T(1,128)}', space=vmem, size = 0x12000, scoped, tag = 'internal scratch']
  %s0 = inlined_call_operand.vmem [shape: bf16[32,64], index: 0, kind: input, shape index: {}]
  %s1 = inlined_call_operand.vmem [shape: bf16[64,32], index: 1, kind: input, shape index: {}]
  %s2 = inlined_call_operand.vmem [shape: f32[1,32], index: 2, kind: input, shape index: {}]
  %s3 = inlined_call_operand.vmem [shape: f32[32,32], index: 3, kind: output, shape index: {}]
  %s4 = sld [smem:[#allocation0]]
  $region22: #{fwd.2} parent=0
    _
  %s6 = ssub.s32 1, %s4
  %s7 = scalar_select 0, %s6, %s4
  // Predicated region
  $region2: #{fwd.2} parent=0 // pred_check
    _
  $region3: #{fwd.2} parent=0 // pred_check_branch
    %9 = sbr.rel (0) target = $region5
  $region4: #{fwd.2} parent=0 // pred_region
    _
  $region5: #{fwd.2} parent=0 // pred_fallthru
    _
  // Predicated region
  $region6: #{fwd.2} parent=0 // pred_check
    _
  $region7: #{fwd.2} parent=0 // pred_check_branch
    %11 = sbr.rel (0) target = $region9
  $region8: #{fwd.2} parent=0 // pred_region
    _
  $region9: #{fwd.2} parent=0 // pred_fallthru
    _
  // Predicated region
  $region10: #{fwd.2} parent=0 // pred_check
    _
  $region11: #{fwd.2} parent=0 // pred_check_branch
    %13 = sbr.rel (0) target = $region13
  $region12: #{fwd.2} parent=0 // pred_region
    _
  $region13: #{fwd.2} parent=0 // pred_fallthru
    _
  %v15 = vld [vmem:[%s0] sm:$0xf]
  %v16 = vld [vmem:[%s0 + $0x4] sm:$0xf]
  %v17 = vld [vmem:[%s0 + $0x8] sm:$0xf]
  %v18 = vld [vmem:[%s0 + $0xc] sm:$0xf]
  %v19 = vld [vmem:[%s1] sm:$0xf]
  %v20 = vld [vmem:[%s1 + $0x4] sm:$0xf]
  %v21 = vld [vmem:[%s1 + $0x8] sm:$0xf]
  %v22 = vld [vmem:[%s1 + $0xc] sm:$0xf]
  %v23 = vld [vmem:[%s1 + $0x10] sm:$0xf]
  %v24 = vld [vmem:[%s1 + $0x14] sm:$0xf]
  %v25 = vld [vmem:[%s1 + $0x18] sm:$0xf]
  %v26 = vld [vmem:[%s1 + $0x1c] sm:$0xf]
  %v27 = vld [vmem:[%s2] sm:$0x1]
  %v29 = vlaneseq
  %v30 = vshrl.u32 %v29, 7
  %v31 = vsub.s32 0, %v30
  %v32 = vrot.slane %v27, %v31
  %v38 = vunpack.c.l.b16 %v15
  %v39 = vunpack.c.l.b16 %v16
  %v40 = vunpack.c.l.b16 %v17
  %v41 = vunpack.c.l.b16 %v18
  %v42 = vpack.c.b16 %v39, %v38
  %v43 = vpack.c.b16 %v41, %v40
  %v52 = vunpack.c.l.b16 %v19
  %v53 = vunpack.c.l.b16 %v20
  %v54 = vunpack.c.l.b16 %v21
  %v55 = vunpack.c.l.b16 %v22
  %v56 = vunpack.c.l.b16 %v23
  %v57 = vunpack.c.l.b16 %v24
  %v58 = vunpack.c.l.b16 %v25
  %v59 = vunpack.c.l.b16 %v26
  %v60 = vpack.c.b16 %v53, %v52
  %v61 = vpack.c.b16 %v55, %v54
  %v62 = vpack.c.b16 %v57, %v56
  %v63 = vpack.c.b16 %v59, %v58
  %vm68 = vcmask 523264
  %v70 = vsel %vm68, %v42, 0
  %v73 = vsel %vm68, %v43, 0
  %75 = vmatprep.subr.bf16.mxu0 0
  %76 = vmatpush1.bf16.msra.mxu0 0
  %77 = vmatprep.subr.bf16.mxu0 0
  %78 = vmatpush1.bf16.msra.mxu0 0
  %79 = vmatprep.subr.bf16.mxu0 0
  %80 = vmatpush1.bf16.msra.mxu0 0
  %81 = vmatprep.subr.bf16.mxu0 0
  %82 = vmatpush1.bf16.msra.mxu0 0
  %83 = vmatprep.subr.bf16.mxu0 0
  %84 = vmatpush1.bf16.msra.mxu0 %v63
  %85 = vmatprep.subr.bf16.mxu0 0
  %86 = vmatpush1.bf16.msra.mxu0 %v62
  %87 = vmatprep.subr.bf16.mxu0 0
  %88 = vmatpush1.bf16.msra.mxu0 %v61
  %89 = vmatprep.subr.bf16.mxu0 0
  %90 = vmatpush1.bf16.msra.mxu0 %v60
  %91 = vmatprep.subr.bf16.mxu0 0
  %92 = vmatpush2.bf16.msra.mxu0 0
  %93 = vmatprep.subr.bf16.mxu0 0
  %94 = vmatpush2.bf16.msra.mxu0 0
  %95 = vmatprep.subr.bf16.mxu0 0
  %96 = vmatpush2.bf16.msra.mxu0 0
  %97 = vmatprep.subr.bf16.mxu0 0
  %98 = vmatpush2.bf16.msra.mxu0 0
  %99 = vmatprep.subr.bf16.mxu0 0
  %100 = vmatpush2.bf16.msra.mxu0 0
  %101 = vmatprep.subr.bf16.mxu0 0
  %102 = vmatpush2.bf16.msra.mxu0 0
  %103 = vmatprep.subr.bf16.mxu0 0
  %104 = vmatpush2.bf16.msra.mxu0 0
  %105 = vmatprep.subr.bf16.mxu0 0
  %106 = vmatpush2.bf16.msra.mxu0 0
  %107 = vmatprep.mubr.bf16.mxu0 0
  %108 = vmatmul.mubr.bf16.gmra.mxu0 %v70
  %v109 = vpop.f32.mrf.mxu0
  %v110 = vadd.f32 %v32, %v109
  %v111 = vpop.f32.mrf.mxu0
  %v112 = vpop.f32.mrf.mxu0
  %v113 = vadd.f32 %v32, %v112
  %v114 = vpop.f32.mrf.mxu0
  %115 = vmatprep.mubr.bf16.mxu0 0
  %116 = vmatmul.mubr.bf16.gmra.mxu0 %v73
  %v117 = vpop.f32.mrf.mxu0
  %v118 = vadd.f32 %v32, %v117
  %v119 = vpop.f32.mrf.mxu0
  %v120 = vpop.f32.mrf.mxu0
  %v121 = vadd.f32 %v32, %v120
  %v122 = vpop.f32.mrf.mxu0
  %123 = vdwg.mxu0
  %vm124 = vcmask 261120
  %125 = vst.msk [vmem:[%s3] sm:$0xff] %vm124, %v110
  %126 = vst.msk [vmem:[%s3 + $0x8] sm:$0xff] %vm124, %v113
  %127 = vst.msk [vmem:[%s3 + $0x10] sm:$0xff] %vm124, %v118
  %128 = vst.msk [vmem:[%s3 + $0x18] sm:$0xff] %vm124, %v121
  // Predicated region
  $region14: #{fwd.2} parent=0 // pred_check
    _
  $region15: #{fwd.2} parent=0 // pred_check_branch
    %130 = sbr.rel (0) target = $region17
  $region16: #{fwd.2} parent=0 // pred_region
    _
  $region17: #{fwd.2} parent=0 // pred_fallthru
    _
  // Predicated region
  $region18: #{fwd.2} parent=0 // pred_check
    _
  $region19: #{fwd.2} parent=0 // pred_check_branch
    %132 = sbr.rel (0) target = $region21
  $region20: #{fwd.2} parent=0 // pred_region
    _
  $region21: #{fwd.2} parent=0 // pred_fallthru
    _

// kernel: fwd.3
$region0: #{fwd.3}
  #allocation0 [shape = 'u32[]', space=smem, size = 0x4, offset = 0x4, fixed_abs, tag = 'smem constant byte address 0x4 - core index']
  #allocation1 [shape = 'u32[144,128]{1,0:T(1,128)}', space=vmem, size = 0x12000, scoped, tag = 'internal scratch']
  %s0 = inlined_call_operand.vmem [shape: bf16[32,64], index: 0, kind: input, shape index: {}]
  %s1 = inlined_call_operand.vmem [shape: bf16[64,32], index: 1, kind: input, shape index: {}]
  %s2 = inlined_call_operand.vmem [shape: f32[1,32], index: 2, kind: input, shape index: {}]
  %s3 = inlined_call_operand.hbm [shape: f32[32,32], index: 3, kind: output, shape index: {}]
  %s4 = sld [smem:[#allocation0]]
  $region22: #{fwd.3} parent=0
    _
  %s6 = ssub.s32 1, %s4
  %s7 = scalar_select 0, %s6, %s4
  $region1: #{fwd.3} parent=0
    #allocation2 [shape = 'u8[16384]{0}', space=vmem, size = 0x4000, scoped, tag = 'output window, operand 0, single buffered']
    #allocation3 [shape = 's32[1]{0}', space=sflag, size = 0x4, scoped, tag = 'scoped memory for fwd.3']
    %8 = vsyncpa [#allocation3], 0
    // Predicated region
    $region2: #{fwd.3} parent=1 // pred_check
      _
    $region3: #{fwd.3} parent=1 // pred_check_branch
      %10 = sbr.rel (0) target = $region5
    $region4: #{fwd.3} parent=1 // pred_region
      _
    $region5: #{fwd.3} parent=1 // pred_fallthru
      _
    // Predicated region
    $region6: #{fwd.3} parent=1 // pred_check
      _
    $region7: #{fwd.3} parent=1 // pred_check_branch
      %12 = sbr.rel (0) target = $region9
    $region8: #{fwd.3} parent=1 // pred_region
      _
    $region9: #{fwd.3} parent=1 // pred_fallthru
      _
    // Predicated region
    $region10: #{fwd.3} parent=1 // pred_check
      _
    $region11: #{fwd.3} parent=1 // pred_check_branch
      %14 = sbr.rel (0) target = $region13
    $region12: #{fwd.3} parent=1 // pred_region
      _
    $region13: #{fwd.3} parent=1 // pred_fallthru
      _
    %v16 = vld [vmem:[%s0] sm:$0xf]
    %v17 = vld [vmem:[%s0 + $0x4] sm:$0xf]
    %v18 = vld [vmem:[%s0 + $0x8] sm:$0xf]
    %v19 = vld [vmem:[%s0 + $0xc] sm:$0xf]
    %v20 = vld [vmem:[%s1] sm:$0xf]
    %v21 = vld [vmem:[%s1 + $0x4] sm:$0xf]
    %v22 = vld [vmem:[%s1 + $0x8] sm:$0xf]
    %v23 = vld [vmem:[%s1 + $0xc] sm:$0xf]
    %v24 = vld [vmem:[%s1 + $0x10] sm:$0xf]
    %v25 = vld [vmem:[%s1 + $0x14] sm:$0xf]
    %v26 = vld [vmem:[%s1 + $0x18] sm:$0xf]
    %v27 = vld [vmem:[%s1 + $0x1c] sm:$0xf]
    %v28 = vld [vmem:[%s2] sm:$0x1]
    %v30 = vlaneseq
    %v31 = vshrl.u32 %v30, 7
    %v32 = vsub.s32 0, %v31
    %v33 = vrot.slane %v28, %v32
    %v39 = vunpack.c.l.b16 %v16
    %v40 = vunpack.c.l.b16 %v17
    %v41 = vunpack.c.l.b16 %v18
    %v42 = vunpack.c.l.b16 %v19
    %v43 = vpack.c.b16 %v40, %v39
    %v44 = vpack.c.b16 %v42, %v41
    %v53 = vunpack.c.l.b16 %v20
    %v54 = vunpack.c.l.b16 %v21
    %v55 = vunpack.c.l.b16 %v22
    %v56 = vunpack.c.l.b16 %v23
    %v57 = vunpack.c.l.b16 %v24
    %v58 = vunpack.c.l.b16 %v25
    %v59 = vunpack.c.l.b16 %v26
    %v60 = vunpack.c.l.b16 %v27
    %v61 = vpack.c.b16 %v54, %v53
    %v62 = vpack.c.b16 %v56, %v55
    %v63 = vpack.c.b16 %v58, %v57
    %v64 = vpack.c.b16 %v60, %v59
    %vm69 = vcmask 523264
    %v71 = vsel %vm69, %v43, 0
    %v74 = vsel %vm69, %v44, 0
    %76 = vmatprep.subr.bf16.mxu0 0
    %77 = vmatpush1.bf16.msra.mxu0 0
    %78 = vmatprep.subr.bf16.mxu0 0
    %79 = vmatpush1.bf16.msra.mxu0 0
    %80 = vmatprep.subr.bf16.mxu0 0
    %81 = vmatpush1.bf16.msra.mxu0 0
    %82 = vmatprep.subr.bf16.mxu0 0
    %83 = vmatpush1.bf16.msra.mxu0 0
    %84 = vmatprep.subr.bf16.mxu0 0
    %85 = vmatpush1.bf16.msra.mxu0 %v64
    %86 = vmatprep.subr.bf16.mxu0 0
    %87 = vmatpush1.bf16.msra.mxu0 %v63
    %88 = vmatprep.subr.bf16.mxu0 0
    %89 = vmatpush1.bf16.msra.mxu0 %v62
    %90 = vmatprep.subr.bf16.mxu0 0
    %91 = vmatpush1.bf16.msra.mxu0 %v61
    %92 = vmatprep.subr.bf16.mxu0 0
    %93 = vmatpush2.bf16.msra.mxu0 0
    %94 = vmatprep.subr.bf16.mxu0 0
    %95 = vmatpush2.bf16.msra.mxu0 0
    %96 = vmatprep.subr.bf16.mxu0 0
    %97 = vmatpush2.bf16.msra.mxu0 0
    %98 = vmatprep.subr.bf16.mxu0 0
    %99 = vmatpush2.bf16.msra.mxu0 0
    %100 = vmatprep.subr.bf16.mxu0 0
    %101 = vmatpush2.bf16.msra.mxu0 0
    %102 = vmatprep.subr.bf16.mxu0 0
    %103 = vmatpush2.bf16.msra.mxu0 0
    %104 = vmatprep.subr.bf16.mxu0 0
    %105 = vmatpush2.bf16.msra.mxu0 0
    %106 = vmatprep.subr.bf16.mxu0 0
    %107 = vmatpush2.bf16.msra.mxu0 0
    %108 = vmatprep.mubr.bf16.mxu0 0
    %109 = vmatmul.mubr.bf16.gmra.mxu0 %v71
    %v110 = vpop.f32.mrf.mxu0
    %v111 = vadd.f32 %v33, %v110
    %v112 = vpop.f32.mrf.mxu0
    %v113 = vpop.f32.mrf.mxu0
    %v114 = vadd.f32 %v33, %v113
    %v115 = vpop.f32.mrf.mxu0
    %116 = vmatprep.mubr.bf16.mxu0 0
    %117 = vmatmul.mubr.bf16.gmra.mxu0 %v74
    %v118 = vpop.f32.mrf.mxu0
    %v119 = vadd.f32 %v33, %v118
    %v120 = vpop.f32.mrf.mxu0
    %v121 = vpop.f32.mrf.mxu0
    %v122 = vadd.f32 %v33, %v121
    %v123 = vpop.f32.mrf.mxu0
    %124 = vdwg.mxu0
    %v125 = vmul.f32 %v111, 0.5
    %v126 = vmul.f32 %v114, 0.5
    %v127 = vmul.f32 %v119, 0.5
    %v128 = vmul.f32 %v122, 0.5
    %v129 = vmul.f32 %v111, 0.70710677
    %v130 = vmul.f32 %v114, 0.70710677
    %v131 = vmul.f32 %v119, 0.70710677
    %v132 = vmul.f32 %v122, 0.70710677
    %v133 = verf.f32.pop %v129
    %v134 = verf.f32.pop %v130
    %v135 = verf.f32.pop %v131
    %v136 = verf.f32.pop %v132
    %v137 = vadd.f32 %v133, 1.0
    %v138 = vadd.f32 %v134, 1.0
    %v139 = vadd.f32 %v135, 1.0
    %v140 = vadd.f32 %v136, 1.0
    %v141 = vmul.f32 %v125, %v137
    %v142 = vmul.f32 %v126, %v138
    %v143 = vmul.f32 %v127, %v139
    %v144 = vmul.f32 %v128, %v140
    %vm145 = vcmask 261120
    %146 = vst.msk [vmem:[#allocation2] sm:$0xff] %vm145, %v141
    %147 = vst.msk [vmem:[#allocation2 + $0x8] sm:$0xff] %vm145, %v142
    %148 = vst.msk [vmem:[#allocation2 + $0x10] sm:$0xff] %vm145, %v143
    %149 = vst.msk [vmem:[#allocation2 + $0x18] sm:$0xff] %vm145, %v144
    // Predicated region
    $region14: #{fwd.3} parent=1 // pred_check
      _
    $region15: #{fwd.3} parent=1 // pred_check_branch
      %151 = sbr.rel (0) target = $region17
    $region16: #{fwd.3} parent=1 // pred_region
      %s153 = ssub.s32 512, 512
      %154 = vsyncadd [#allocation3], %s153
      %s155 = sshll.u32 [#allocation2], 4
      %s156 = int_to_ptr.vmem [resolvable:$true] %s155
      %161 = dma.vmem_to_hbm [thread:$0]  %s156, 512, %s3, [#allocation3], 128, 128, 8
    $region17: #{fwd.3} parent=1 // pred_fallthru
      _
    // Predicated region
    $region18: #{fwd.3} parent=1 // pred_check
      _
    $region19: #{fwd.3} parent=1 // pred_check_branch
      %163 = sbr.rel (0) target = $region21
    $region20: #{fwd.3} parent=1 // pred_region
      %164 = dma.done [#allocation3], 512
    $region21: #{fwd.3} parent=1 // pred_fallthru
      _
    %165 = vsyncpa [#allocation3], 1

</llo_original>
